<compile_context>
chip_gen: v5e
topology: v5e:2x2
jax: 0.10.0
libtpu: 0.0.40
codegen_flags: <defaults>
</compile_context>

<pallas_src>
import functools

import jax
import jax.numpy as jnp
from jax.experimental import pallas as pl
from jax.experimental.pallas import tpu as pltpu


def _round_up(x, m):
    return ((x + m - 1) // m) * m


def wide_kernel(x_ref, w_ref, b_ref, o_ref):
    # x_ref: (TB, TD) VMEM   w_ref: (1, TD) VMEM   b_ref: (1,) SMEM   o_ref: (TB, 1) VMEM
    k = pl.program_id(1)

    @pl.when(k == 0)
    def _init():
        o_ref[...] = jnp.zeros_like(o_ref)

    # dot-per-row on the VPU (elementwise mul) + XLU (lane reduce); no MXU, no w.T
    partial = jnp.sum(x_ref[...] * w_ref[...], axis=-1, keepdims=True)  # (TB, 1) f32
    o_ref[...] += partial

    @pl.when(k == pl.num_programs(1) - 1)
    def _finalize():
        o_ref[...] += b_ref[0]          # scalar bias from SMEM, added once


@functools.partial(jax.jit, static_argnames=("tb", "td"))
def wide_forward(x, weight, bias, *, tb=512, td=2048):
    """x: (B, D) f32, weight: (1, D) f32, bias: (1,) f32 -> (B, 1) f32."""
    B, D = x.shape

    TB = min(tb, _round_up(B, 8))       # sublane-aligned batch tile
    TD = min(td, _round_up(D, 128))     # lane-aligned feature tile
    B_pad = _round_up(B, TB)
    D_pad = _round_up(D, TD)

    x_p = x.astype(jnp.float32)
    w_p = weight.astype(jnp.float32)
    if B_pad != B or D_pad != D:
        x_p = jnp.pad(x_p, ((0, B_pad - B), (0, D_pad - D)))
    if D_pad != D:
        w_p = jnp.pad(w_p, ((0, 0), (0, D_pad - D)))

    grid = (B_pad // TB, D_pad // TD)   # reduction (feature) axis last

    out = pl.pallas_call(
        wide_kernel,
        out_shape=jax.ShapeDtypeStruct((B_pad, 1), jnp.float32),
        grid=grid,
        in_specs=[
            pl.BlockSpec((TB, TD), lambda i, k: (i, k)),            # streamed x tiles
            pl.BlockSpec((1, TD), lambda i, k: (0, k)),             # weight slice, constant in i
            pl.BlockSpec(memory_space=pltpu.MemorySpace.SMEM),      # scalar bias in SMEM
        ],
        out_specs=pl.BlockSpec((TB, 1), lambda i, k: (i, 0)),       # resident f32 accumulator
        compiler_params=pltpu.CompilerParams(
            dimension_semantics=("parallel", "arbitrary"),
        ),
    )(x_p, w_p, bias.astype(jnp.float32))

    return out[:B]


if __name__ == "__main__":
    key = jax.random.PRNGKey(0)
    kx, kw, kb = jax.random.split(key, 3)

    # Small shapes consistent with the module's forward (batch, input_dim)
    batch, input_dim = 8, 32
    x = jax.random.normal(kx, (batch, input_dim), dtype=jnp.float32)

    # nn.Linear-shaped parameters: W (1, D), b (1,)
    bound = 1.0 / (input_dim ** 0.5)
    weight = jax.random.uniform(kw, (1, input_dim), jnp.float32, -bound, bound)
    bias = jax.random.uniform(kb, (1,), jnp.float32, -bound, bound)

    out = wide_forward(x, weight, bias)
    out = jax.block_until_ready(out)

    ref = x @ weight.T + bias
    assert out.shape == (batch, 1)
    assert jnp.allclose(out, ref, atol=1e-5, rtol=1e-5)

    # Second check: non-aligned shape with multiple batch/feature tiles
    # (exercises padding, the k-accumulator path, and the batch grid).
    b2, d2 = 520, 260
    x2 = jax.random.normal(kx, (b2, d2), dtype=jnp.float32)
    w2 = jax.random.uniform(kw, (1, d2), jnp.float32, -0.1, 0.1)
    bi2 = jax.random.uniform(kb, (1,), jnp.float32, -0.1, 0.1)
    out2 = jax.block_until_ready(wide_forward(x2, w2, bi2, tb=256, td=128))
    ref2 = x2 @ w2.T + bi2
    assert out2.shape == (b2, 1)
    assert jnp.allclose(out2, ref2, atol=1e-4, rtol=1e-4)

    print("KERNEL_OK")
</pallas_src>

<mosaic_0001>
module attributes {stable_mosaic.version = 11 : i64} {
  func.func @wide_kernel(%arg0: i32, %arg1: i32, %arg2: memref<8x128xf32, #tpu.memory_space<vmem>>, %arg3: memref<1x128xf32, #tpu.memory_space<vmem>>, %arg4: memref<1xf32, #tpu.memory_space<smem>>, %arg5: memref<8x1xf32, #tpu.memory_space<vmem>>) attributes {dimension_semantics = [#tpu.dimension_semantics<parallel>, #tpu.dimension_semantics<arbitrary>], iteration_bounds = array<i64: 1, 1>, scalar_prefetch = 0 : i64, scratch_operands = 0 : i64, tpu.core_type = #tpu.core_type<tc>, window_params = [{transform_indices = @transform_0, window_bounds = array<i64: 8, 128>}, {transform_indices = @transform_1, window_bounds = array<i64: 1, 128>}, {transform_indices = @transform_2, window_bounds = array<i64: 1>}, {transform_indices = @transform_3, window_bounds = array<i64: 8, 1>}]} {
    %c0_i32 = arith.constant 0 : i32
    %0 = arith.cmpi eq, %arg1, %c0_i32 : i32
    %1 = arith.extui %0 : i1 to i32
    %c0_i32_0 = arith.constant 0 : i32
    %2 = arith.cmpi ne, %1, %c0_i32_0 : i32
    scf.if %2 {
      %cst_10 = arith.constant 0.000000e+00 : f32
      %15 = vector.broadcast %cst_10 : f32 to vector<8x1xf32>
      %c0_11 = arith.constant 0 : index
      %c0_12 = arith.constant 0 : index
      %16 = vector.load %arg5[%c0_11, %c0_12] : memref<8x1xf32, #tpu.memory_space<vmem>>, vector<8x1xf32>
      tpu.vector_store %arg5[%c0_11, %c0_12], %15 {strides = array<i32>} : memref<8x1xf32, #tpu.memory_space<vmem>>, vector<8x1xf32>,
    } else {
    }
    %c0 = arith.constant 0 : index
    %c0_1 = arith.constant 0 : index
    %3 = vector.load %arg2[%c0, %c0_1] : memref<8x128xf32, #tpu.memory_space<vmem>>, vector<8x128xf32>
    %c0_2 = arith.constant 0 : index
    %c0_3 = arith.constant 0 : index
    %4 = vector.load %arg3[%c0_2, %c0_3] : memref<1x128xf32, #tpu.memory_space<vmem>>, vector<1x128xf32>
    %5 = vector.broadcast %4 : vector<1x128xf32> to vector<8x128xf32>
    %6 = arith.mulf %3, %5 : vector<8x128xf32>
    %cst = arith.constant dense<0.000000e+00> : vector<8xf32>
    %7 = vector.multi_reduction <add>, %6, %cst [1] : vector<8x128xf32> to vector<8xf32>
    %8 = vector.shape_cast %7 : vector<8xf32> to vector<8x1xf32>
    %c0_4 = arith.constant 0 : index
    %c0_5 = arith.constant 0 : index
    %9 = vector.load %arg5[%c0_4, %c0_5] : memref<8x1xf32, #tpu.memory_space<vmem>>, vector<8x1xf32>
    %10 = arith.addf %9, %8 : vector<8x1xf32>
    %c0_6 = arith.constant 0 : index
    %c0_7 = arith.constant 0 : index
    %11 = vector.load %arg5[%c0_6, %c0_7] : memref<8x1xf32, #tpu.memory_space<vmem>>, vector<8x1xf32>
    tpu.vector_store %arg5[%c0_6, %c0_7], %10 {strides = array<i32>} : memref<8x1xf32, #tpu.memory_space<vmem>>, vector<8x1xf32>,
    %c0_i32_8 = arith.constant 0 : i32
    %12 = arith.cmpi eq, %arg1, %c0_i32_8 : i32
    %13 = arith.extui %12 : i1 to i32
    %c0_i32_9 = arith.constant 0 : i32
    %14 = arith.cmpi ne, %13, %c0_i32_9 : i32
    scf.if %14 {
      %c0_10 = arith.constant 0 : index
      %c0_11 = arith.constant 0 : index
      %15 = vector.load %arg5[%c0_10, %c0_11] : memref<8x1xf32, #tpu.memory_space<vmem>>, vector<8x1xf32>
      %c0_12 = arith.constant 0 : index
      %16 = memref.load %arg4[%c0_12] : memref<1xf32, #tpu.memory_space<smem>>
      %17 = vector.broadcast %16 : f32 to vector<8x1xf32>
      %18 = arith.addf %15, %17 : vector<8x1xf32>
      %c0_13 = arith.constant 0 : index
      %c0_14 = arith.constant 0 : index
      %19 = vector.load %arg5[%c0_13, %c0_14] : memref<8x1xf32, #tpu.memory_space<vmem>>, vector<8x1xf32>
      tpu.vector_store %arg5[%c0_13, %c0_14], %18 {strides = array<i32>} : memref<8x1xf32, #tpu.memory_space<vmem>>, vector<8x1xf32>,
    } else {
    }
    return
  }
  func.func @transform_0(%arg0: i32, %arg1: i32) -> (i32, i32) {
    %c0_i32 = arith.constant 0 : i32
    return %arg0, %arg1 : i32, i32
  }
  func.func @transform_1(%arg0: i32, %arg1: i32) -> (i32, i32) {
    %c0_i32 = arith.constant 0 : i32
    %c0_i32_0 = arith.constant 0 : i32
    return %c0_i32, %arg1 : i32, i32
  }
  func.func @transform_2(%arg0: i32, %arg1: i32) -> i32 {
    %c0_i32 = arith.constant 0 : i32
    %c0_i32_0 = arith.constant 0 : i32
    return %c0_i32 : i32
  }
  func.func @transform_3(%arg0: i32, %arg1: i32) -> (i32, i32) {
    %c0_i32 = arith.constant 0 : i32
    %c0_i32_0 = arith.constant 0 : i32
    return %arg0, %c0_i32 : i32, i32
  }
}

</mosaic_0001>

<llo_original>
// kernel: wide_forward.1
$region0: #{wide_forward.1}
  #allocation0 [shape = 'u32[]', space=smem, size = 0x4, offset = 0x4, fixed_abs, tag = 'smem constant byte address 0x4 - core index']
  #allocation1 [shape = 'u32[72,128]{1,0:T(1,128)}', space=vmem, size = 0x9000, scoped, tag = 'internal scratch']
  #allocation2 [shape = 'f32[1]{0:T(128)S(6)}', space=smem, size = 0x200, scoped, tag = 'scoped memory for wide_forward.1']
  %s0 = inlined_call_operand.vmem [shape: f32[8,128], index: 0, kind: input, shape index: {}]
  %s1 = inlined_call_operand.vmem [shape: f32[1,128], index: 1, kind: input, shape index: {}]
  %s2 = inlined_call_operand.<no memory space> [shape: f32[1], index: 2, kind: input, shape index: {}]
  %s3 = inlined_call_operand.vmem [shape: f32[8,1], index: 3, kind: output, shape index: {}]
  %s4 = sld [smem:[#allocation0]]
  $region30: #{wide_forward.1} parent=0
    _
  %s6 = ssub.s32 1, %s4
  %s7 = scalar_select 0, %s6, %s4
  %8 = sst [smem:[#allocation2]] %s2
  // Predicated region
  $region2: #{wide_forward.1} parent=0 // pred_check
    _
  $region3: #{wide_forward.1} parent=0 // pred_check_branch
    %10 = sbr.rel (0) target = $region5
  $region4: #{wide_forward.1} parent=0 // pred_region
    _
  $region5: #{wide_forward.1} parent=0 // pred_fallthru
    _
  // Predicated region
  $region6: #{wide_forward.1} parent=0 // pred_check
    _
  $region7: #{wide_forward.1} parent=0 // pred_check_branch
    %12 = sbr.rel (0) target = $region9
  $region8: #{wide_forward.1} parent=0 // pred_region
    _
  $region9: #{wide_forward.1} parent=0 // pred_fallthru
    _
  // Predicated region
  $region10: #{wide_forward.1} parent=0 // pred_check
    _
  $region11: #{wide_forward.1} parent=0 // pred_check_branch
    %14 = sbr.rel (0) target = $region13
  $region12: #{wide_forward.1} parent=0 // pred_region
    _
  $region13: #{wide_forward.1} parent=0 // pred_fallthru
    _
  %p15 = scmp.eq.s32.totalorder 0, 0
  // Predicated region
  $region14: #{wide_forward.1} parent=0 // pred_check
    %p16 = pneg %p15
  $region15: #{wide_forward.1} parent=0 // pred_check_branch
    %18 = sbr.rel (%p16) target = $region17
  $region16: #{wide_forward.1} parent=0 // pred_region
    %vm19 = vcmask 7168
    %20 = vst.msk [vmem:[%s3] sm:$0xff] %vm19, 0.0
  $region17: #{wide_forward.1} parent=0 // pred_fallthru
    _
  %v21 = vld [vmem:[%s0] sm:$0xff]
  %v22 = vld [vmem:[%s1] sm:$0x1]
  %v24 = vperm.slane %v22, 0
  %v26 = vmul.f32 %v21, %v24
  %27 = vadd.xlane.f32.xlu0 %v26
  %v28 = vpop.xlane.xlu0 %27
  %v29 = vld [vmem:[%s3] sm:$0xff]
  %v30 = vadd.f32 %v29, %v28
  %vm31 = vcmask 7168
  %32 = vst.msk [vmem:[%s3] sm:$0xff] %vm31, %v30
  // Predicated region
  $region18: #{wide_forward.1} parent=0 // pred_check
    %p33 = pneg %p15
  $region19: #{wide_forward.1} parent=0 // pred_check_branch
    %35 = sbr.rel (%p33) target = $region21
  $region20: #{wide_forward.1} parent=0 // pred_region
    %v36 = vld [vmem:[%s3] sm:$0xff]
    %s37 = sld [smem:[#allocation2]]
    %v38 = vstv %s37
    %v39 = vadd.f32 %v36, %v38
    %40 = vst.msk [vmem:[%s3] sm:$0xff] %vm31, %v39
  $region21: #{wide_forward.1} parent=0 // pred_fallthru
    _
  // Predicated region
  $region22: #{wide_forward.1} parent=0 // pred_check
    _
  $region23: #{wide_forward.1} parent=0 // pred_check_branch
    %42 = sbr.rel (0) target = $region25
  $region24: #{wide_forward.1} parent=0 // pred_region
    _
  $region25: #{wide_forward.1} parent=0 // pred_fallthru
    _
  // Predicated region
  $region26: #{wide_forward.1} parent=0 // pred_check
    _
  $region27: #{wide_forward.1} parent=0 // pred_check_branch
    %44 = sbr.rel (0) target = $region29
  $region28: #{wide_forward.1} parent=0 // pred_region
    _
  $region29: #{wide_forward.1} parent=0 // pred_fallthru
    _

</llo_original>
